<compile_context>
chip_gen: v7x
topology: tpu7x:2x2x1
jax: 0.10.0
libtpu: 0.0.40
codegen_flags: <defaults>
</compile_context>

<pallas_src>
import jax
import jax.numpy as jnp
from jax.experimental import pallas as pl
from jax.experimental.pallas import tpu as pltpu

_LANE = 128       # lane width (last dim)
_SUBLANE = 8      # f32 sublane packing (second-to-last dim)
_MAX_TILE_M = 2048  # batch-tile cap (sweepable; VMEM use is tiny at these widths)


def _round_up(x, m):
    return ((x + m - 1) // m) * m


def _leaky_relu(x, negative_slope=0.01):
    # Matches torch.nn.functional.leaky_relu default (slope 0.01).
    return jnp.where(x > 0, x, negative_slope * x)


# ----------------------------------------------------------------------------
# Kernel
# ----------------------------------------------------------------------------
def qnetwork_kernel(x_ref, w1_ref, b1_ref, w2_ref, b2_ref, w3_ref, b3_ref, out_ref):
    cdt = w1_ref.dtype  # compute dtype for MXU operands (bf16 by default)

    x = x_ref[...]
    if x.dtype != cdt:
        x = x.astype(cdt)

    # fc_1 + leaky_relu  (accumulate f32, elementwise epilogue in f32)
    h1 = jnp.dot(x, w1_ref[...], preferred_element_type=jnp.float32) + b1_ref[...]
    h1 = _leaky_relu(h1)                                              # (TM, Hp) f32

    # fc_2 + leaky_relu
    h2 = jnp.dot(h1.astype(cdt), w2_ref[...],
                 preferred_element_type=jnp.float32) + b2_ref[...]
    h2 = _leaky_relu(h2)                                              # (TM, Hp) f32

    # fc_3 (narrow output: only action_dim real columns ever leave the kernel)
    q = jnp.dot(h2.astype(cdt), w3_ref[...],
                preferred_element_type=jnp.float32) + b3_ref[...]
    out_ref[...] = q.astype(out_ref.dtype)                            # (TM, A)


# ----------------------------------------------------------------------------
# Wrapper
# ----------------------------------------------------------------------------
def qnetwork_forward(x, kparams, action_dim):
    """x: (B, state_dim) float32 (or bfloat16).
    kparams: packed params (see pack_params_for_kernel).
    Returns (B, action_dim) float32 Q-values."""
    w1, b1 = kparams["w1"], kparams["b1"]
    w2, b2 = kparams["w2"], kparams["b2"]
    w3, b3 = kparams["w3"], kparams["b3"]

    B, S = x.shape
    Hp = w1.shape[1]
    A = w3.shape[1]
    assert A == action_dim

    # Only pad the batch for the tiny B<8 corner case (sublane minimum). For all
    # larger batches we rely on Pallas' partial-last-block handling, avoiding an
    # extra HBM read+write of x that a wrapper-side jnp.pad would cost.
    if B < _SUBLANE:
        x = jnp.pad(x, ((0, _SUBLANE - B), (0, 0)))
    B_eff = x.shape[0]

    # Batch tiling: as large as possible (amortize ~0.35us/step overhead) while
    # keeping >=2 (and an even number of) grid steps so both v7x TensorCores
    # get work via dimension_semantics=("parallel",).
    num_steps = max(2, pl.cdiv(B_eff, _MAX_TILE_M))
    num_steps += num_steps % 2                       # even step count
    tile_m = _round_up(pl.cdiv(B_eff, num_steps), _SUBLANE)
    grid = (pl.cdiv(B_eff, tile_m),)

    flops = 2 * B_eff * (S * Hp + Hp * Hp + Hp * A)
    bytes_accessed = (
        x.size * x.dtype.itemsize                                   # x
        + sum(w.size * w.dtype.itemsize for w in (w1, w2, w3))      # weights (once)
        + sum(b.size * b.dtype.itemsize for b in (b1, b2, b3))      # biases (once)
        + B_eff * A * 4                                             # narrow f32 output
    )

    out = pl.pallas_call(
        qnetwork_kernel,
        out_shape=jax.ShapeDtypeStruct((B_eff, A), jnp.float32),
        grid=grid,
        in_specs=[
            pl.BlockSpec((tile_m, S), lambda i: (i, 0)),   # x: tiled over batch
            pl.BlockSpec((S, Hp),     lambda i: (0, 0)),   # w1: resident
            pl.BlockSpec((1, Hp),     lambda i: (0, 0)),   # b1: resident
            pl.BlockSpec((Hp, Hp),    lambda i: (0, 0)),   # w2: resident
            pl.BlockSpec((1, Hp),     lambda i: (0, 0)),   # b2: resident
            pl.BlockSpec((Hp, A),     lambda i: (0, 0)),   # w3: resident (narrow)
            pl.BlockSpec((1, A),      lambda i: (0, 0)),   # b3: resident (narrow)
        ],
        out_specs=pl.BlockSpec((tile_m, A), lambda i: (i, 0)),
        compiler_params=pltpu.CompilerParams(
            dimension_semantics=("parallel",),             # dual-TC on v7x
        ),
        cost_estimate=pl.CostEstimate(
            flops=flops, transcendentals=0, bytes_accessed=bytes_accessed),
    )(x, w1, b1, w2, b2, w3, b3)

    return out if B_eff == B else out[:B]


# ----------------------------------------------------------------------------
# Parameter setup
# ----------------------------------------------------------------------------
def init_qnetwork_params(key, state_dim, hidden_dim, action_dim):
    """PyTorch-nn.Linear-style init: U(-1/sqrt(fan_in), 1/sqrt(fan_in)) for both
    weights and biases. Weights stored (in, out), i.e. torch weight transposed."""
    def linear(k, fan_in, fan_out):
        kw, kb = jax.random.split(k)
        bound = 1.0 / jnp.sqrt(jnp.float32(fan_in))
        w = jax.random.uniform(kw, (fan_in, fan_out), jnp.float32, -bound, bound)
        b = jax.random.uniform(kb, (1, fan_out), jnp.float32, -bound, bound)
        return w, b

    k1, k2, k3 = jax.random.split(key, 3)
    w1, b1 = linear(k1, state_dim, hidden_dim)
    w2, b2 = linear(k2, hidden_dim, hidden_dim)
    w3, b3 = linear(k3, hidden_dim, action_dim)
    return {"w1": w1, "b1": b1, "w2": w2, "b2": b2, "w3": w3, "b3": b3}


def pack_params_for_kernel(p, state_dim, hidden_dim, action_dim,
                           compute_dtype=jnp.bfloat16):
    """Zero-pad the hidden dim to exactly 128 (dense MXU operands); keep the
    action dim at its real width so the output writeback stays narrow. Zero
    padding is exact: padded rows/columns contribute nothing. Weights are cast
    to compute_dtype (bf16 default); biases stay f32 for the f32 epilogue."""
    hp = _round_up(hidden_dim, _LANE)

    def pad2(a, rows, cols):
        return jnp.pad(a, ((0, rows - a.shape[0]), (0, cols - a.shape[1])))

    return {
        "w1": pad2(p["w1"], state_dim, hp).astype(compute_dtype),
        "b1": pad2(p["b1"], 1, hp),
        "w2": pad2(p["w2"], hp, hp).astype(compute_dtype),
        "b2": pad2(p["b2"], 1, hp),
        "w3": pad2(p["w3"], hp, action_dim).astype(compute_dtype),
        "b3": p["b3"],
    }


# ----------------------------------------------------------------------------
# References
# ----------------------------------------------------------------------------
def qnetwork_reference_f32(x, p):
    """Pure-f32 reference (matches the PyTorch module exactly)."""
    h1 = _leaky_relu(x @ p["w1"] + p["b1"])
    h2 = _leaky_relu(h1 @ p["w2"] + p["b2"])
    return h2 @ p["w3"] + p["b3"]


def qnetwork_reference_packed(x, kp):
    """Reference following the kernel's exact dtype path (compute_dtype MXU
    operands, f32 accumulation / epilogue)."""
    cdt = kp["w1"].dtype
    h1 = _leaky_relu(jnp.dot(x.astype(cdt), kp["w1"],
                             preferred_element_type=jnp.float32) + kp["b1"])
    h2 = _leaky_relu(jnp.dot(h1.astype(cdt), kp["w2"],
                             preferred_element_type=jnp.float32) + kp["b2"])
    return jnp.dot(h2.astype(cdt), kp["w3"],
                   preferred_element_type=jnp.float32) + kp["b3"]


if __name__ == "__main__":
    # Small shapes consistent with the module: batch=2, state_dim=16,
    # hidden_dim=32, action_dim=4. (At B=2 this call is launch-latency bound;
    # in a real RL loop, batch many env states into one qnetwork_forward call.)
    batch, state_dim, hidden_dim, action_dim = 2, 16, 32, 4

    key = jax.random.PRNGKey(0)
    kx, kx2, kp = jax.random.split(key, 3)
    x = jax.random.normal(kx, (batch, state_dim), dtype=jnp.float32)

    params = init_qnetwork_params(kp, state_dim, hidden_dim, action_dim)
    kparams = pack_params_for_kernel(params, state_dim, hidden_dim, action_dim)

    out = qnetwork_forward(x, kparams, action_dim)
    out = jax.block_until_ready(out)
    assert out.shape == (batch, action_dim)

    # Tight check against a plain-JAX reference on the same dtype path.
    ref_packed = qnetwork_reference_packed(x, kparams)
    assert jnp.allclose(out, ref_packed, atol=1e-3, rtol=1e-3), (out, ref_packed)

    # Looser sanity check against the pure-f32 (PyTorch-equivalent) math.
    ref_f32 = qnetwork_reference_f32(x, params)
    assert jnp.allclose(out, ref_f32, atol=5e-2, rtol=5e-2), (out, ref_f32)

    # Second check with an odd batch (exercises the no-pad partial last block
    # and the multi-step / dual-TC grid path).
    x2 = jax.random.normal(kx2, (137, state_dim), dtype=jnp.float32)
    out2 = jax.block_until_ready(qnetwork_forward(x2, kparams, action_dim))
    assert out2.shape == (137, action_dim)
    assert jnp.allclose(out2, qnetwork_reference_packed(x2, kparams),
                        atol=1e-3, rtol=1e-3)
    assert jnp.allclose(out2, qnetwork_reference_f32(x2, params),
                        atol=5e-2, rtol=5e-2)

    print("KERNEL_OK")
</pallas_src>

<mosaic_0001>
module attributes {stable_mosaic.version = 11 : i64} {
  func.func @qnetwork_kernel(%arg0: i32, %arg1: memref<8x16xf32, #tpu.memory_space<vmem>>, %arg2: memref<16x128xbf16, #tpu.memory_space<vmem>>, %arg3: memref<1x128xf32, #tpu.memory_space<vmem>>, %arg4: memref<128x128xbf16, #tpu.memory_space<vmem>>, %arg5: memref<1x128xf32, #tpu.memory_space<vmem>>, %arg6: memref<128x4xbf16, #tpu.memory_space<vmem>>, %arg7: memref<1x4xf32, #tpu.memory_space<vmem>>, %arg8: memref<8x4xf32, #tpu.memory_space<vmem>>) attributes {dimension_semantics = [#tpu.dimension_semantics<parallel>], iteration_bounds = array<i64: 1>, scalar_prefetch = 0 : i64, scratch_operands = 0 : i64, tpu.core_type = #tpu.core_type<tc>, window_params = [{transform_indices = @transform_0, window_bounds = array<i64: 8, 16>}, {pipeline_mode = #tpu.pipeline_mode<synchronous>, transform_indices = @transform_1, window_bounds = array<i64: 16, 128>}, {pipeline_mode = #tpu.pipeline_mode<synchronous>, transform_indices = @transform_2, window_bounds = array<i64: 1, 128>}, {pipeline_mode = #tpu.pipeline_mode<synchronous>, transform_indices = @transform_3, window_bounds = array<i64: 128, 128>}, {pipeline_mode = #tpu.pipeline_mode<synchronous>, transform_indices = @transform_4, window_bounds = array<i64: 1, 128>}, {pipeline_mode = #tpu.pipeline_mode<synchronous>, transform_indices = @transform_5, window_bounds = array<i64: 128, 4>}, {pipeline_mode = #tpu.pipeline_mode<synchronous>, transform_indices = @transform_6, window_bounds = array<i64: 1, 4>}, {transform_indices = @transform_7, window_bounds = array<i64: 8, 4>}]} {
    %c0 = arith.constant 0 : index
    %c0_0 = arith.constant 0 : index
    %0 = vector.load %arg1[%c0, %c0_0] : memref<8x16xf32, #tpu.memory_space<vmem>>, vector<8x16xf32>
    %1 = arith.truncf %0 : vector<8x16xf32> to vector<8x16xbf16>
    %c0_1 = arith.constant 0 : index
    %c0_2 = arith.constant 0 : index
    %2 = vector.load %arg2[%c0_1, %c0_2] : memref<16x128xbf16, #tpu.memory_space<vmem>>, vector<16x128xbf16>
    %cst = arith.constant dense<0.000000e+00> : vector<8x128xf32>
    %3 = tpu.matmul %1, %2, %cst {dimension_numbers = #tpu.dot_dimension_numbers<[1], [0], [0], [1], [0, 0, 1, 1], [], []>} : vector<8x16xbf16>, vector<16x128xbf16>, vector<8x128xf32> -> vector<8x128xf32>
    %c0_3 = arith.constant 0 : index
    %c0_4 = arith.constant 0 : index
    %4 = vector.load %arg3[%c0_3, %c0_4] : memref<1x128xf32, #tpu.memory_space<vmem>>, vector<1x128xf32>
    %5 = vector.broadcast %4 : vector<1x128xf32> to vector<8x128xf32>
    %6 = arith.addf %3, %5 : vector<8x128xf32>
    %cst_5 = arith.constant 0.000000e+00 : f32
    %7 = vector.broadcast %cst_5 : f32 to vector<8x128xf32>
    %8 = arith.cmpf ogt, %6, %7 : vector<8x128xf32>
    %cst_6 = arith.constant 0.00999999977 : f32
    %9 = vector.broadcast %cst_6 : f32 to vector<8x128xf32>
    %10 = arith.mulf %9, %6 : vector<8x128xf32>
    %11 = arith.select %8, %6, %10 : vector<8x128xi1>, vector<8x128xf32>
    %12 = arith.truncf %11 : vector<8x128xf32> to vector<8x128xbf16>
    %c0_7 = arith.constant 0 : index
    %c0_8 = arith.constant 0 : index
    %13 = vector.load %arg4[%c0_7, %c0_8] : memref<128x128xbf16, #tpu.memory_space<vmem>>, vector<128x128xbf16>
    %cst_9 = arith.constant dense<0.000000e+00> : vector<8x128xf32>
    %14 = tpu.matmul %12, %13, %cst_9 {dimension_numbers = #tpu.dot_dimension_numbers<[1], [0], [0], [1], [0, 0, 1, 1], [], []>} : vector<8x128xbf16>, vector<128x128xbf16>, vector<8x128xf32> -> vector<8x128xf32>
    %c0_10 = arith.constant 0 : index
    %c0_11 = arith.constant 0 : index
    %15 = vector.load %arg5[%c0_10, %c0_11] : memref<1x128xf32, #tpu.memory_space<vmem>>, vector<1x128xf32>
    %16 = vector.broadcast %15 : vector<1x128xf32> to vector<8x128xf32>
    %17 = arith.addf %14, %16 : vector<8x128xf32>
    %cst_12 = arith.constant 0.000000e+00 : f32
    %18 = vector.broadcast %cst_12 : f32 to vector<8x128xf32>
    %19 = arith.cmpf ogt, %17, %18 : vector<8x128xf32>
    %cst_13 = arith.constant 0.00999999977 : f32
    %20 = vector.broadcast %cst_13 : f32 to vector<8x128xf32>
    %21 = arith.mulf %20, %17 : vector<8x128xf32>
    %22 = arith.select %19, %17, %21 : vector<8x128xi1>, vector<8x128xf32>
    %23 = arith.truncf %22 : vector<8x128xf32> to vector<8x128xbf16>
    %c0_14 = arith.constant 0 : index
    %c0_15 = arith.constant 0 : index
    %24 = vector.load %arg6[%c0_14, %c0_15] : memref<128x4xbf16, #tpu.memory_space<vmem>>, vector<128x4xbf16>
    %cst_16 = arith.constant dense<0.000000e+00> : vector<8x4xf32>
    %25 = tpu.matmul %23, %24, %cst_16 {dimension_numbers = #tpu.dot_dimension_numbers<[1], [0], [0], [1], [0, 0, 1, 1], [], []>} : vector<8x128xbf16>, vector<128x4xbf16>, vector<8x4xf32> -> vector<8x4xf32>
    %c0_17 = arith.constant 0 : index
    %c0_18 = arith.constant 0 : index
    %26 = vector.load %arg7[%c0_17, %c0_18] : memref<1x4xf32, #tpu.memory_space<vmem>>, vector<1x4xf32>
    %27 = vector.broadcast %26 : vector<1x4xf32> to vector<8x4xf32>
    %28 = arith.addf %25, %27 : vector<8x4xf32>
    %c0_19 = arith.constant 0 : index
    %c0_20 = arith.constant 0 : index
    %29 = vector.load %arg8[%c0_19, %c0_20] : memref<8x4xf32, #tpu.memory_space<vmem>>, vector<8x4xf32>
    tpu.vector_store %arg8[%c0_19, %c0_20], %28 {strides = array<i32>} : memref<8x4xf32, #tpu.memory_space<vmem>>, vector<8x4xf32>,
    return
  }
  func.func @transform_0(%arg0: i32) -> (i32, i32) {
    %c0_i32 = arith.constant 0 : i32
    %c0_i32_0 = arith.constant 0 : i32
    return %arg0, %c0_i32 : i32, i32
  }
  func.func @transform_1(%arg0: i32) -> (i32, i32) {
    %c0_i32 = arith.constant 0 : i32
    %c0_i32_0 = arith.constant 0 : i32
    %c0_i32_1 = arith.constant 0 : i32
    return %c0_i32, %c0_i32_0 : i32, i32
  }
  func.func @transform_2(%arg0: i32) -> (i32, i32) {
    %c0_i32 = arith.constant 0 : i32
    %c0_i32_0 = arith.constant 0 : i32
    %c0_i32_1 = arith.constant 0 : i32
    return %c0_i32, %c0_i32_0 : i32, i32
  }
  func.func @transform_3(%arg0: i32) -> (i32, i32) {
    %c0_i32 = arith.constant 0 : i32
    %c0_i32_0 = arith.constant 0 : i32
    %c0_i32_1 = arith.constant 0 : i32
    return %c0_i32, %c0_i32_0 : i32, i32
  }
  func.func @transform_4(%arg0: i32) -> (i32, i32) {
    %c0_i32 = arith.constant 0 : i32
    %c0_i32_0 = arith.constant 0 : i32
    %c0_i32_1 = arith.constant 0 : i32
    return %c0_i32, %c0_i32_0 : i32, i32
  }
  func.func @transform_5(%arg0: i32) -> (i32, i32) {
    %c0_i32 = arith.constant 0 : i32
    %c0_i32_0 = arith.constant 0 : i32
    %c0_i32_1 = arith.constant 0 : i32
    return %c0_i32, %c0_i32_0 : i32, i32
  }
  func.func @transform_6(%arg0: i32) -> (i32, i32) {
    %c0_i32 = arith.constant 0 : i32
    %c0_i32_0 = arith.constant 0 : i32
    %c0_i32_1 = arith.constant 0 : i32
    return %c0_i32, %c0_i32_0 : i32, i32
  }
  func.func @transform_7(%arg0: i32) -> (i32, i32) {
    %c0_i32 = arith.constant 0 : i32
    %c0_i32_0 = arith.constant 0 : i32
    return %arg0, %c0_i32 : i32, i32
  }
}

</mosaic_0001>

<llo_original>
// kernel: tpu_custom_call.1
$region0: #{tpu_custom_call.1}
  #allocation0 [shape = 'u32[]', space=smem, size = 0x4, offset = 0x4, fixed_abs, tag = 'smem constant byte address 0x4 - core index']
  #allocation1 [shape = 'u32[144,128]{1,0:T(1,128)}', space=vmem, size = 0x12000, scoped, tag = 'internal scratch']
  %s0 = inlined_call_operand.vmem [shape: f32[8,16], index: 0, kind: input, shape index: {}]
  %s1 = inlined_call_operand.hbm [shape: bf16[16,128], index: 1, kind: input, shape index: {}]
  %s2 = inlined_call_operand.vmem [shape: f32[1,128], index: 2, kind: input, shape index: {}]
  %s3 = inlined_call_operand.vmem [shape: bf16[128,128], index: 3, kind: input, shape index: {}]
  %s4 = inlined_call_operand.vmem [shape: f32[1,128], index: 4, kind: input, shape index: {}]
  %s5 = inlined_call_operand.vmem [shape: bf16[128,4], index: 5, kind: input, shape index: {}]
  %s6 = inlined_call_operand.vmem [shape: f32[1,4], index: 6, kind: input, shape index: {}]
  %s7 = inlined_call_operand.vmem [shape: f32[8,4], index: 7, kind: output, shape index: {}]
  %s8 = sld [smem:[#allocation0]]
  $region42: #{tpu_custom_call.1} parent=0
    _
  %s10 = ssub.s32 1, %s8
  %s11 = scalar_select 0, %s10, %s8
  $region1: #{tpu_custom_call.1} parent=0
    #allocation2 [shape = 'u8[4096]{0}', space=vmem, size = 0x1000, scoped, tag = 'input window, operand 1, single buffered']
    #allocation3 [shape = 's32[1]{0}', space=sflag, size = 0x4, scoped, tag = 'scoped memory for tpu_custom_call.1']
    %12 = vsyncpa [#allocation3], 0
    // Predicated region
    $region2: #{tpu_custom_call.1} parent=1 // pred_check
      _
    $region3: #{tpu_custom_call.1} parent=1 // pred_check_branch
      %14 = sbr.rel (0) target = $region5
    $region4: #{tpu_custom_call.1} parent=1 // pred_region
      _
    $region5: #{tpu_custom_call.1} parent=1 // pred_fallthru
      _
    // Predicated region
    $region6: #{tpu_custom_call.1} parent=1 // pred_check
      _
    $region7: #{tpu_custom_call.1} parent=1 // pred_check_branch
      %16 = sbr.rel (0) target = $region9
    $region8: #{tpu_custom_call.1} parent=1 // pred_region
      %s18 = ssub.s32 128, 128
      %19 = vsyncadd [#allocation3], %s18
      %s20 = sshll.u32 [#allocation2], 4
      %s21 = int_to_ptr.vmem [resolvable:$true] %s20
      %26 = dma.hbm_to_vmem [thread:$0]  %s1, 128, %s21, [#allocation3], 64, 64, 4
    $region9: #{tpu_custom_call.1} parent=1 // pred_fallthru
      _
    // Predicated region
    $region10: #{tpu_custom_call.1} parent=1 // pred_check
      _
    $region11: #{tpu_custom_call.1} parent=1 // pred_check_branch
      %28 = sbr.rel (0) target = $region13
    $region12: #{tpu_custom_call.1} parent=1 // pred_region
      _
    $region13: #{tpu_custom_call.1} parent=1 // pred_fallthru
      _
    // Predicated region
    $region14: #{tpu_custom_call.1} parent=1 // pred_check
      _
    $region15: #{tpu_custom_call.1} parent=1 // pred_check_branch
      %30 = sbr.rel (0) target = $region17
    $region16: #{tpu_custom_call.1} parent=1 // pred_region
      _
    $region17: #{tpu_custom_call.1} parent=1 // pred_fallthru
      _
    // Predicated region
    $region18: #{tpu_custom_call.1} parent=1 // pred_check
      _
    $region19: #{tpu_custom_call.1} parent=1 // pred_check_branch
      %32 = sbr.rel (0) target = $region21
    $region20: #{tpu_custom_call.1} parent=1 // pred_region
      _
    $region21: #{tpu_custom_call.1} parent=1 // pred_fallthru
      _
    // Predicated region
    $region22: #{tpu_custom_call.1} parent=1 // pred_check
      _
    $region23: #{tpu_custom_call.1} parent=1 // pred_check_branch
      %34 = sbr.rel (0) target = $region25
    $region24: #{tpu_custom_call.1} parent=1 // pred_region
      _
    $region25: #{tpu_custom_call.1} parent=1 // pred_fallthru
      _
    // Predicated region
    $region26: #{tpu_custom_call.1} parent=1 // pred_check
      _
    $region27: #{tpu_custom_call.1} parent=1 // pred_check_branch
      %36 = sbr.rel (0) target = $region29
    $region28: #{tpu_custom_call.1} parent=1 // pred_region
      _
    $region29: #{tpu_custom_call.1} parent=1 // pred_fallthru
      _
    // Predicated region
    $region30: #{tpu_custom_call.1} parent=1 // pred_check
      _
    $region31: #{tpu_custom_call.1} parent=1 // pred_check_branch
      %38 = sbr.rel (0) target = $region33
    $region32: #{tpu_custom_call.1} parent=1 // pred_region
      %39 = dma.done [#allocation3], 128
    $region33: #{tpu_custom_call.1} parent=1 // pred_fallthru
      _
    %v41 = vld [vmem:[%s0] sm:$0xff]
    %v42 = vpack.c.bf16 %v41, %v41
    %v43 = vld [vmem:[#allocation2] sm:$0xf]
    %v44 = vld [vmem:[#allocation2 + $0x4] sm:$0xf]
    %v45 = vld [vmem:[%s2] sm:$0x1]
    %v47 = vlaneseq
    %v48 = vshrl.u32 %v47, 7
    %v49 = vsub.s32 0, %v48
    %v50 = vrot.slane %v45, %v49
    %v54 = vunpack.c.l.b16 %v43
    %v55 = vunpack.c.l.b16 %v44
    %v56 = vpack.c.b16 %v55, %v54
    %vm58 = vcmask 130048
    %v60 = vsel %vm58, %v42, 0
    %62 = vmatprep.subr.bf16.mxu0 0
    %63 = vmatpush1.bf16.msra.mxu0 %v56
    %64 = vmatprep.subr.bf16.mxu0 0
    %65 = vmatpush1.bf16.msra.mxu0 0
    %66 = vmatprep.subr.bf16.mxu0 0
    %67 = vmatpush1.bf16.msra.mxu0 0
    %68 = vmatprep.subr.bf16.mxu0 0
    %69 = vmatpush1.bf16.msra.mxu0 0
    %70 = vmatprep.subr.bf16.mxu0 0
    %71 = vmatpush1.bf16.msra.mxu0 0
    %72 = vmatprep.subr.bf16.mxu0 0
    %73 = vmatpush1.bf16.msra.mxu0 0
    %74 = vmatprep.subr.bf16.mxu0 0
    %75 = vmatpush1.bf16.msra.mxu0 0
    %76 = vmatprep.subr.bf16.mxu0 0
    %77 = vmatpush1.bf16.msra.mxu0 0
    %78 = vmatprep.subr.bf16.mxu0 0
    %79 = vmatpush1.bf16.msra.mxu0 0
    %80 = vmatprep.subr.bf16.mxu0 0
    %81 = vmatpush1.bf16.msra.mxu0 0
    %82 = vmatprep.subr.bf16.mxu0 0
    %83 = vmatpush1.bf16.msra.mxu0 0
    %84 = vmatprep.subr.bf16.mxu0 0
    %85 = vmatpush1.bf16.msra.mxu0 0
    %86 = vmatprep.subr.bf16.mxu0 0
    %87 = vmatpush1.bf16.msra.mxu0 0
    %88 = vmatprep.subr.bf16.mxu0 0
    %89 = vmatpush1.bf16.msra.mxu0 0
    %90 = vmatprep.subr.bf16.mxu0 0
    %91 = vmatpush1.bf16.msra.mxu0 0
    %92 = vmatprep.subr.bf16.mxu0 0
    %93 = vmatpush1.bf16.msra.mxu0 0
    %94 = vmatprep.mubr.bf16.mxu0 0
    %95 = vmatmul.mubr.bf16.gmra.mrb[0].mxu0 %v60
    %v96 = vpop.f32.mrb[0].mxu0
    %v97 = vadd.f32 %v50, %v96
    %v98 = vpop.f32.mrb[0].mxu0
    %v99 = vpop.f32.mrb[0].mxu0
    %v100 = vpop.f32.mrb[0].mxu0
    %101 = vdwg.mxu0
    %vm102 = vcmp.gt.f32.partialorder %v97, 0.0
    %v103 = vmul.f32 %v97, 0.01
    %v104 = vsel %vm102, %v97, %v103
    %v105 = vpack.c.bf16 %v104, %v104
    %v106 = vld [vmem:[%s3] sm:$0xf]
    %v107 = vld [vmem:[%s3 + $0x4] sm:$0xf]
    %v108 = vld [vmem:[%s3 + $0x8] sm:$0xf]
    %v109 = vld [vmem:[%s3 + $0xc] sm:$0xf]
    %v110 = vld [vmem:[%s3 + $0x10] sm:$0xf]
    %v111 = vld [vmem:[%s3 + $0x14] sm:$0xf]
    %v112 = vld [vmem:[%s3 + $0x18] sm:$0xf]
    %v113 = vld [vmem:[%s3 + $0x1c] sm:$0xf]
    %v114 = vld [vmem:[%s3 + $0x20] sm:$0xf]
    %v115 = vld [vmem:[%s3 + $0x24] sm:$0xf]
    %v116 = vld [vmem:[%s3 + $0x28] sm:$0xf]
    %v117 = vld [vmem:[%s3 + $0x2c] sm:$0xf]
    %v118 = vld [vmem:[%s3 + $0x30] sm:$0xf]
    %v119 = vld [vmem:[%s3 + $0x34] sm:$0xf]
    %v120 = vld [vmem:[%s3 + $0x38] sm:$0xf]
    %v121 = vld [vmem:[%s3 + $0x3c] sm:$0xf]
    %v122 = vld [vmem:[%s4] sm:$0x1]
    %v124 = vlaneseq
    %v125 = vshrl.u32 %v124, 7
    %v126 = vsub.s32 0, %v125
    %v127 = vrot.slane %v122, %v126
    %v145 = vunpack.c.l.b16 %v106
    %v146 = vunpack.c.l.b16 %v107
    %v147 = vunpack.c.l.b16 %v108
    %v148 = vunpack.c.l.b16 %v109
    %v149 = vunpack.c.l.b16 %v110
    %v150 = vunpack.c.l.b16 %v111
    %v151 = vunpack.c.l.b16 %v112
    %v152 = vunpack.c.l.b16 %v113
    %v153 = vunpack.c.l.b16 %v114
    %v154 = vunpack.c.l.b16 %v115
    %v155 = vunpack.c.l.b16 %v116
    %v156 = vunpack.c.l.b16 %v117
    %v157 = vunpack.c.l.b16 %v118
    %v158 = vunpack.c.l.b16 %v119
    %v159 = vunpack.c.l.b16 %v120
    %v160 = vunpack.c.l.b16 %v121
    %v161 = vpack.c.b16 %v146, %v145
    %v162 = vpack.c.b16 %v148, %v147
    %v163 = vpack.c.b16 %v150, %v149
    %v164 = vpack.c.b16 %v152, %v151
    %v165 = vpack.c.b16 %v154, %v153
    %v166 = vpack.c.b16 %v156, %v155
    %v167 = vpack.c.b16 %v158, %v157
    %v168 = vpack.c.b16 %v160, %v159
    %177 = vmatprep.subr.bf16.mxu0 0
    %178 = vmatpush1.bf16.msra.mxu0 %v161
    %179 = vmatprep.subr.bf16.mxu0 0
    %180 = vmatpush1.bf16.msra.mxu0 %v162
    %181 = vmatprep.subr.bf16.mxu0 0
    %182 = vmatpush1.bf16.msra.mxu0 %v163
    %183 = vmatprep.subr.bf16.mxu0 0
    %184 = vmatpush1.bf16.msra.mxu0 %v164
    %185 = vmatprep.subr.bf16.mxu0 0
    %186 = vmatpush1.bf16.msra.mxu0 %v165
    %187 = vmatprep.subr.bf16.mxu0 0
    %188 = vmatpush1.bf16.msra.mxu0 %v166
    %189 = vmatprep.subr.bf16.mxu0 0
    %190 = vmatpush1.bf16.msra.mxu0 %v167
    %191 = vmatprep.subr.bf16.mxu0 0
    %192 = vmatpush1.bf16.msra.mxu0 %v168
    %193 = vmatprep.subr.bf16.mxu0 0
    %194 = vmatpush1.bf16.msra.mxu0 0
    %195 = vmatprep.subr.bf16.mxu0 0
    %196 = vmatpush1.bf16.msra.mxu0 0
    %197 = vmatprep.subr.bf16.mxu0 0
    %198 = vmatpush1.bf16.msra.mxu0 0
    %199 = vmatprep.subr.bf16.mxu0 0
    %200 = vmatpush1.bf16.msra.mxu0 0
    %201 = vmatprep.subr.bf16.mxu0 0
    %202 = vmatpush1.bf16.msra.mxu0 0
    %203 = vmatprep.subr.bf16.mxu0 0
    %204 = vmatpush1.bf16.msra.mxu0 0
    %205 = vmatprep.subr.bf16.mxu0 0
    %206 = vmatpush1.bf16.msra.mxu0 0
    %207 = vmatprep.subr.bf16.mxu0 0
    %208 = vmatpush1.bf16.msra.mxu0 0
    %209 = vmatprep.mubr.bf16.mxu0 0
    %210 = vmatmul.mubr.bf16.gmra.mrb[0].mxu0 %v105
    %v211 = vpop.f32.mrb[0].mxu0
    %v212 = vadd.f32 %v127, %v211
    %v213 = vpop.f32.mrb[0].mxu0
    %v214 = vpop.f32.mrb[0].mxu0
    %v215 = vpop.f32.mrb[0].mxu0
    %216 = vdwg.mxu0
    %vm217 = vcmp.gt.f32.partialorder %v212, 0.0
    %v218 = vmul.f32 %v212, 0.01
    %v219 = vsel %vm217, %v212, %v218
    %v220 = vpack.c.bf16 %v219, %v219
    %v221 = vld [vmem:[%s5] sm:$0xf]
    %v222 = vld [vmem:[%s5 + $0x4] sm:$0xf]
    %v223 = vld [vmem:[%s5 + $0x8] sm:$0xf]
    %v224 = vld [vmem:[%s5 + $0xc] sm:$0xf]
    %v225 = vld [vmem:[%s5 + $0x10] sm:$0xf]
    %v226 = vld [vmem:[%s5 + $0x14] sm:$0xf]
    %v227 = vld [vmem:[%s5 + $0x18] sm:$0xf]
    %v228 = vld [vmem:[%s5 + $0x1c] sm:$0xf]
    %v229 = vld [vmem:[%s5 + $0x20] sm:$0xf]
    %v230 = vld [vmem:[%s5 + $0x24] sm:$0xf]
    %v231 = vld [vmem:[%s5 + $0x28] sm:$0xf]
    %v232 = vld [vmem:[%s5 + $0x2c] sm:$0xf]
    %v233 = vld [vmem:[%s5 + $0x30] sm:$0xf]
    %v234 = vld [vmem:[%s5 + $0x34] sm:$0xf]
    %v235 = vld [vmem:[%s5 + $0x38] sm:$0xf]
    %v236 = vld [vmem:[%s5 + $0x3c] sm:$0xf]
    %v237 = vld [vmem:[%s6] sm:$0x1]
    %v239 = vlaneseq
    %v240 = vshrl.u32 %v239, 7
    %v241 = vsub.s32 0, %v240
    %v242 = vrot.slane %v237, %v241
    %v260 = vunpack.c.l.b16 %v221
    %v261 = vunpack.c.l.b16 %v222
    %v262 = vunpack.c.l.b16 %v223
    %v263 = vunpack.c.l.b16 %v224
    %v264 = vunpack.c.l.b16 %v225
    %v265 = vunpack.c.l.b16 %v226
    %v266 = vunpack.c.l.b16 %v227
    %v267 = vunpack.c.l.b16 %v228
    %v268 = vunpack.c.l.b16 %v229
    %v269 = vunpack.c.l.b16 %v230
    %v270 = vunpack.c.l.b16 %v231
    %v271 = vunpack.c.l.b16 %v232
    %v272 = vunpack.c.l.b16 %v233
    %v273 = vunpack.c.l.b16 %v234
    %v274 = vunpack.c.l.b16 %v235
    %v275 = vunpack.c.l.b16 %v236
    %v276 = vpack.c.b16 %v261, %v260
    %v277 = vpack.c.b16 %v263, %v262
    %v278 = vpack.c.b16 %v265, %v264
    %v279 = vpack.c.b16 %v267, %v266
    %v280 = vpack.c.b16 %v269, %v268
    %v281 = vpack.c.b16 %v271, %v270
    %v282 = vpack.c.b16 %v273, %v272
    %v283 = vpack.c.b16 %v275, %v274
    %292 = vmatprep.subr.bf16.mxu0 0
    %293 = vmatpush1.bf16.msra.mxu0 %v276
    %294 = vmatprep.subr.bf16.mxu0 0
    %295 = vmatpush1.bf16.msra.mxu0 %v277
    %296 = vmatprep.subr.bf16.mxu0 0
    %297 = vmatpush1.bf16.msra.mxu0 %v278
    %298 = vmatprep.subr.bf16.mxu0 0
    %299 = vmatpush1.bf16.msra.mxu0 %v279
    %300 = vmatprep.subr.bf16.mxu0 0
    %301 = vmatpush1.bf16.msra.mxu0 %v280
    %302 = vmatprep.subr.bf16.mxu0 0
    %303 = vmatpush1.bf16.msra.mxu0 %v281
    %304 = vmatprep.subr.bf16.mxu0 0
    %305 = vmatpush1.bf16.msra.mxu0 %v282
    %306 = vmatprep.subr.bf16.mxu0 0
    %307 = vmatpush1.bf16.msra.mxu0 %v283
    %308 = vmatprep.subr.bf16.mxu0 0
    %309 = vmatpush1.bf16.msra.mxu0 0
    %310 = vmatprep.subr.bf16.mxu0 0
    %311 = vmatpush1.bf16.msra.mxu0 0
    %312 = vmatprep.subr.bf16.mxu0 0
    %313 = vmatpush1.bf16.msra.mxu0 0
    %314 = vmatprep.subr.bf16.mxu0 0
    %315 = vmatpush1.bf16.msra.mxu0 0
    %316 = vmatprep.subr.bf16.mxu0 0
    %317 = vmatpush1.bf16.msra.mxu0 0
    %318 = vmatprep.subr.bf16.mxu0 0
    %319 = vmatpush1.bf16.msra.mxu0 0
    %320 = vmatprep.subr.bf16.mxu0 0
    %321 = vmatpush1.bf16.msra.mxu0 0
    %322 = vmatprep.subr.bf16.mxu0 0
    %323 = vmatpush1.bf16.msra.mxu0 0
    %324 = vmatprep.mubr.bf16.mxu0 0
    %325 = vmatmul.mubr.bf16.gmra.mrb[0].mxu0 %v220
    %v326 = vpop.f32.mrb[0].mxu0
    %v327 = vadd.f32 %v242, %v326
    %v328 = vpop.f32.mrb[0].mxu0
    %v329 = vpop.f32.mrb[0].mxu0
    %v330 = vpop.f32.mrb[0].mxu0
    %331 = vdwg.mxu0
    %vm332 = vcmask 31744
    %333 = vst.msk [vmem:[%s7] sm:$0xff] %vm332, %v327
    // Predicated region
    $region34: #{tpu_custom_call.1} parent=1 // pred_check
      _
    $region35: #{tpu_custom_call.1} parent=1 // pred_check_branch
      %335 = sbr.rel (0) target = $region37
    $region36: #{tpu_custom_call.1} parent=1 // pred_region
      _
    $region37: #{tpu_custom_call.1} parent=1 // pred_fallthru
      _
    // Predicated region
    $region38: #{tpu_custom_call.1} parent=1 // pred_check
      _
    $region39: #{tpu_custom_call.1} parent=1 // pred_check_branch
      %337 = sbr.rel (0) target = $region41
    $region40: #{tpu_custom_call.1} parent=1 // pred_region
      _
    $region41: #{tpu_custom_call.1} parent=1 // pred_fallthru
      _
    %338 = vsyncpa [#allocation3], 1

</llo_original>
